<compile_context>
chip_gen: v5e
topology: v5e:2x2
jax: 0.10.0
libtpu: 0.0.40
codegen_flags: <defaults>
</compile_context>

<pallas_src>
import functools

import jax
import jax.numpy as jnp
from jax.experimental import pallas as pl
from jax.experimental.pallas import tpu as pltpu

_LANES = 128       # lane width of a vreg
_TM_MAX = 1024     # max sublane-rows per block: (1024, 128) f32 = 512 KiB


def _round_up(x, m):
    return ((x + m - 1) // m) * m


def _mse_partial_kernel(p_ref, t_ref, o_ref, *, rows_valid, block_rows, needs_mask):
    """Per-block per-lane partial sum of (p - t)^2.

    p_ref/t_ref: (block_rows, 128) input tiles.
    o_ref:       (1, 128) per-lane partial sums for this grid step.
    """
    d = p_ref[...].astype(jnp.float32) - t_ref[...].astype(jnp.float32)

    if needs_mask:  # static: only emitted when rows % block_rows != 0
        i = pl.program_id(0)
        row_ids = jax.lax.broadcasted_iota(jnp.int32, d.shape, 0)
        valid = rows_valid - i * block_rows  # rows of this block with real data
        d = jnp.where(row_ids < valid, d, 0.0)  # mask BEFORE squaring (kills garbage/NaN)

    # Sum over the sublane axis only -> lane-dense (1, 128) store.  The single
    # expensive cross-lane reduction happens exactly once, outside the kernel.
    o_ref[...] = jnp.sum(d * d, axis=0, keepdims=True)


def _mse_loss_impl(predictions, target):
    """Pallas equivalent of torch.pow(predictions - target, 2).mean()."""
    assert predictions.shape == target.shape, "shapes must match (no broadcasting)"
    n_total = predictions.size

    # Flatten (free for contiguous arrays — pure reshape, no copy).
    p_flat = predictions.reshape(-1)
    t_flat = target.reshape(-1)

    # Only when the element count is not a multiple of the lane width do we
    # pay for a pad copy (cannot form a (rows, 128) view otherwise).  Padded
    # elements are zero in both inputs -> diff == 0 -> no effect on the sum.
    rem = n_total % _LANES
    if rem:
        pad = _LANES - rem
        p_flat = jnp.pad(p_flat, (0, pad))
        t_flat = jnp.pad(t_flat, (0, pad))

    rows = p_flat.size // _LANES
    p2 = p_flat.reshape(rows, _LANES)
    t2 = t_flat.reshape(rows, _LANES)

    # Adaptive block height: as large as possible (amortize per-step overhead)
    # but never larger than needed, and always a multiple of 8 sublanes.
    tm = min(_TM_MAX, _round_up(rows, 8))
    n_blocks = pl.cdiv(rows, tm)
    needs_mask = (rows % tm) != 0  # last block has garbage rows -> mask them

    kernel = functools.partial(
        _mse_partial_kernel,
        rows_valid=rows,
        block_rows=tm,
        needs_mask=needs_mask,
    )

    partials = pl.pallas_call(
        kernel,
        out_shape=jax.ShapeDtypeStruct((n_blocks, _LANES), jnp.float32),
        grid_spec=pltpu.PrefetchScalarGridSpec(
            num_scalar_prefetch=0,
            grid=(n_blocks,),
            in_specs=[
                pl.BlockSpec((tm, _LANES), lambda i: (i, 0)),
                pl.BlockSpec((tm, _LANES), lambda i: (i, 0)),
            ],
            out_specs=pl.BlockSpec((1, _LANES), lambda i: (i, 0)),
        ),
        compiler_params=pltpu.CompilerParams(
            # No cross-step carry -> fully parallel; megacore-shardable on v7x.
            dimension_semantics=("parallel",),
        ),
    )(p2, t2)

    # Tiny final reduction (n_blocks x 128 floats) + divide by TRUE count.
    return jnp.sum(partials) * (1.0 / float(n_total))


mse_loss = jax.jit(_mse_loss_impl)


if __name__ == "__main__":
    key = jax.random.PRNGKey(0)
    k_pred, k_tgt = jax.random.split(key)
    # Small NCHW shapes consistent with a typical use of this loss.
    shape = (2, 4, 16, 16)
    predictions = jax.random.normal(k_pred, shape, dtype=jnp.float32)
    target = jax.random.normal(k_tgt, shape, dtype=jnp.float32)

    loss = mse_loss(predictions, target)
    jax.block_until_ready(loss)

    # Cross-check against plain-JAX reference.
    ref = jnp.mean((predictions - target) ** 2)
    assert jnp.allclose(loss, ref, rtol=1e-5, atol=1e-6), (loss, ref)

    print("KERNEL_OK")
</pallas_src>

<mosaic_0001>
module attributes {stable_mosaic.version = 11 : i64} {
  func.func @_mse_partial_kernel(%arg0: i32, %arg1: memref<16x128xf32, #tpu.memory_space<vmem>>, %arg2: memref<16x128xf32, #tpu.memory_space<vmem>>, %arg3: memref<1x128xf32, #tpu.memory_space<vmem>>) attributes {dimension_semantics = [#tpu.dimension_semantics<parallel>], iteration_bounds = array<i64: 1>, scalar_prefetch = 0 : i64, scratch_operands = 0 : i64, tpu.core_type = #tpu.core_type<tc>, window_params = [{transform_indices = @transform_0, window_bounds = array<i64: 16, 128>}, {transform_indices = @transform_1, window_bounds = array<i64: 16, 128>}, {transform_indices = @transform_2, window_bounds = array<i64: 1, 128>}]} {
    %c0 = arith.constant 0 : index
    %c0_0 = arith.constant 0 : index
    %0 = vector.load %arg1[%c0, %c0_0] : memref<16x128xf32, #tpu.memory_space<vmem>>, vector<16x128xf32>
    %c0_1 = arith.constant 0 : index
    %c0_2 = arith.constant 0 : index
    %1 = vector.load %arg2[%c0_1, %c0_2] : memref<16x128xf32, #tpu.memory_space<vmem>>, vector<16x128xf32>
    %2 = arith.subf %0, %1 : vector<16x128xf32>
    %3 = arith.mulf %2, %2 : vector<16x128xf32>
    %cst = arith.constant dense<0.000000e+00> : vector<128xf32>
    %4 = vector.multi_reduction <add>, %3, %cst [0] : vector<16x128xf32> to vector<128xf32>
    %5 = vector.shape_cast %4 : vector<128xf32> to vector<1x128xf32>
    %c0_3 = arith.constant 0 : index
    %c0_4 = arith.constant 0 : index
    %6 = vector.load %arg3[%c0_3, %c0_4] : memref<1x128xf32, #tpu.memory_space<vmem>>, vector<1x128xf32>
    tpu.vector_store %arg3[%c0_3, %c0_4], %5 {strides = array<i32>} : memref<1x128xf32, #tpu.memory_space<vmem>>, vector<1x128xf32>,
    return
  }
  func.func @transform_0(%arg0: i32) -> (i32, i32) {
    %c0_i32 = arith.constant 0 : i32
    %c0_i32_0 = arith.constant 0 : i32
    return %arg0, %c0_i32 : i32, i32
  }
  func.func @transform_1(%arg0: i32) -> (i32, i32) {
    %c0_i32 = arith.constant 0 : i32
    %c0_i32_0 = arith.constant 0 : i32
    return %arg0, %c0_i32 : i32, i32
  }
  func.func @transform_2(%arg0: i32) -> (i32, i32) {
    %c0_i32 = arith.constant 0 : i32
    %c0_i32_0 = arith.constant 0 : i32
    return %arg0, %c0_i32 : i32, i32
  }
}

</mosaic_0001>

<llo_original>
// kernel: _mse_loss_impl.1
$region0: #{_mse_loss_impl.1}
  #allocation0 [shape = 'u32[]', space=smem, size = 0x4, offset = 0x4, fixed_abs, tag = 'smem constant byte address 0x4 - core index']
  #allocation1 [shape = 'u32[72,128]{1,0:T(1,128)}', space=vmem, size = 0x9000, scoped, tag = 'internal scratch']
  %s0 = inlined_call_operand.vmem [shape: f32[16,128], index: 0, kind: input, shape index: {}]
  %s1 = inlined_call_operand.vmem [shape: f32[16,128], index: 1, kind: input, shape index: {}]
  %s2 = inlined_call_operand.vmem [shape: f32[1,128], index: 2, kind: output, shape index: {}]
  %s3 = sld [smem:[#allocation0]]
  $region18: #{_mse_loss_impl.1} parent=0
    _
  %s5 = ssub.s32 1, %s3
  %s6 = scalar_select 0, %s5, %s3
  // Predicated region
  $region2: #{_mse_loss_impl.1} parent=0 // pred_check
    _
  $region3: #{_mse_loss_impl.1} parent=0 // pred_check_branch
    %8 = sbr.rel (0) target = $region5
  $region4: #{_mse_loss_impl.1} parent=0 // pred_region
    _
  $region5: #{_mse_loss_impl.1} parent=0 // pred_fallthru
    _
  // Predicated region
  $region6: #{_mse_loss_impl.1} parent=0 // pred_check
    _
  $region7: #{_mse_loss_impl.1} parent=0 // pred_check_branch
    %10 = sbr.rel (0) target = $region9
  $region8: #{_mse_loss_impl.1} parent=0 // pred_region
    _
  $region9: #{_mse_loss_impl.1} parent=0 // pred_fallthru
    _
  %v11 = vld [vmem:[%s0] sm:$0xff]
  %v12 = vld [vmem:[%s0 + $0x8] sm:$0xff]
  %v13 = vld [vmem:[%s1] sm:$0xff]
  %v14 = vld [vmem:[%s1 + $0x8] sm:$0xff]
  %v15 = vsub.f32 %v11, %v13
  %v16 = vsub.f32 %v12, %v14
  %v17 = vmul.f32 %v15, %v15
  %v18 = vmul.f32 %v16, %v16
  %v19 = vadd.f32 %v17, %v18
  %v20 = vrot.slane %v19, 4
  %v21 = vadd.f32 %v19, %v20
  %v22 = vrot.slane %v21, 2
  %v23 = vadd.f32 %v21, %v22
  %v24 = vrot.slane %v23, 1
  %v25 = vadd.f32 %v23, %v24
  %26 = vst [vmem:[%s2] sm:$0x1] %v25
  // Predicated region
  $region10: #{_mse_loss_impl.1} parent=0 // pred_check
    _
  $region11: #{_mse_loss_impl.1} parent=0 // pred_check_branch
    %28 = sbr.rel (0) target = $region13
  $region12: #{_mse_loss_impl.1} parent=0 // pred_region
    _
  $region13: #{_mse_loss_impl.1} parent=0 // pred_fallthru
    _
  // Predicated region
  $region14: #{_mse_loss_impl.1} parent=0 // pred_check
    _
  $region15: #{_mse_loss_impl.1} parent=0 // pred_check_branch
    %30 = sbr.rel (0) target = $region17
  $region16: #{_mse_loss_impl.1} parent=0 // pred_region
    _
  $region17: #{_mse_loss_impl.1} parent=0 // pred_fallthru
    _

</llo_original>
